<compile_context>
chip_gen: v7x
topology: tpu7x:2x2x1
jax: 0.10.0
libtpu: 0.0.40
codegen_flags: <defaults>
</compile_context>

<pallas_src>
import functools
import math

import jax
import jax.numpy as jnp
from jax.experimental import pallas as pl
from jax.experimental.pallas import tpu as pltpu


def _round_up(x, m):
    return ((x + m - 1) // m) * m


def _flash_qkv_kernel(q_ref, k_ref, v_ref, o_ref, m_ref, l_ref, acc_ref, *,
                      scale, hb, ch, t_real, tk, need_mask):
    """One (batch, head-group, q-tile) block; iterates over k tiles (last grid axis).

    q_ref/k_ref/v_ref: [1, Hb*C, tile] views of the packed qkv tensor.
    o_ref:             [1, Hb*C, tq] output block (written at the last k step).
    m_ref/l_ref:       [Hb, 1, tq]  running max / running sum (f32).
    acc_ref:           [Hb, C, tq]  unnormalized output accumulator (f32).
    """
    ik = pl.program_id(3)
    nk = pl.num_programs(3)

    @pl.when(ik == 0)
    def _():
        m_ref[...] = jnp.full_like(m_ref, -jnp.inf)
        l_ref[...] = jnp.zeros_like(l_ref)
        acc_ref[...] = jnp.zeros_like(acc_ref)

    tq = q_ref.shape[-1]
    # Scale applied once: (ch**-0.25)*(ch**-0.25) == ch**-0.5 folded into q
    # (q is [Hb,C,tq], much smaller than the [Hb,tk,tq] score tile).
    q = q_ref[0].reshape(hb, ch, tq) * scale      # [Hb, C, tq] (input dtype)
    k = k_ref[0].reshape(hb, ch, tk)              # [Hb, C, tk]
    v = v_ref[0].reshape(hb, ch, tk)              # [Hb, C, tk]

    # s[h, s_key, t_q] = sum_c k[h,c,s] * q[h,c,t]   (no transposes needed)
    s = jax.lax.dot_general(
        k, q, (((1,), (1,)), ((0,), (0,))),
        preferred_element_type=jnp.float32)       # [Hb, tk, tq] f32

    m_prev = m_ref[...]                           # [Hb, 1, tq]
    m_curr = jnp.max(s, axis=1, keepdims=True)    # [Hb, 1, tq]
    m_new = jnp.maximum(m_prev, m_curr)
    alpha = jnp.exp(m_prev - m_new)               # rescale factor for old stats
    p = jnp.exp(s - m_new)                        # [Hb, tk, tq] f32

    if need_mask:
        # Zero out probabilities for padded key positions (>= real length).
        key_pos = ik * tk + jax.lax.broadcasted_iota(jnp.int32, s.shape, 1)
        p = jnp.where(key_pos < t_real, p, 0.0)

    l_ref[...] = alpha * l_ref[...] + jnp.sum(p, axis=1, keepdims=True)

    # acc[h, c, t] += sum_s v[h,c,s] * p[h,s,t]
    pv = jax.lax.dot_general(
        v, p.astype(v.dtype), (((2,), (1,)), ((0,), (0,))),
        preferred_element_type=jnp.float32)       # [Hb, C, tq]
    acc_ref[...] = alpha * acc_ref[...] + pv
    m_ref[...] = m_new

    @pl.when(ik == nk - 1)
    def _():
        # Single normalization at the end: reciprocal of a [Hb,1,tq] vector
        # broadcast-multiplied into the accumulator (no [T,T] divide).
        inv_l = 1.0 / l_ref[...]
        out = acc_ref[...] * inv_l                # [Hb, C, tq] f32
        o_ref[0] = out.reshape(hb * ch, tq).astype(o_ref.dtype)


def qkv_attention(qkv, n_heads, *, tile_cap=256, heads_per_block=None):
    """qkv: [N, 3*H*C, T]  ->  [N, H*C, T].

    tile_cap: max T tile.  256 is safe for v7x's 64 MiB VMEM (the f32 [Hb,tk,tq]
    score tile is the dominant intermediate); 512 is a good choice on
    v5e / v6e with 128 MiB VMEM.
    """
    bs, width, length = qkv.shape
    assert width % (3 * n_heads) == 0
    ch = width // (3 * n_heads)
    assert ch % 8 == 0, "per-head channel dim must be a multiple of 8 (TPU sublane)"

    scale = 1.0 / math.sqrt(ch)   # applied once to q

    # --- heads per grid step (amortizes per-step overhead, sublane-dense) ---
    if heads_per_block is None:
        hb = 1
        for cand in range(1, min(n_heads, 8) + 1):
            if n_heads % cand == 0:
                hb = cand
    else:
        hb = heads_per_block
    assert n_heads % hb == 0
    n_groups = n_heads // hb

    # --- pad T so stores are lane-dense and tiles are (.,128)-aligned ---
    t_pad = _round_up(length, 128)
    tile = 128
    cand = 256
    while cand <= tile_cap:
        if t_pad % cand == 0:
            tile = cand
        cand *= 2
    need_mask = (t_pad != length)
    qkv_p = jnp.pad(qkv, ((0, 0), (0, 0), (0, t_pad - length))) if need_mask else qkv

    nq = t_pad // tile
    nk = t_pad // tile
    blk = (1, hb * ch, tile)

    kernel = functools.partial(
        _flash_qkv_kernel, scale=scale, hb=hb, ch=ch,
        t_real=length, tk=tile, need_mask=need_mask)

    itemsize = jnp.dtype(qkv.dtype).itemsize
    cost = pl.CostEstimate(
        flops=4 * bs * n_heads * ch * t_pad * t_pad,
        transcendentals=bs * n_heads * t_pad * t_pad,
        bytes_accessed=qkv_p.size * itemsize + bs * n_heads * ch * t_pad * itemsize,
    )

    out = pl.pallas_call(
        kernel,
        out_shape=jax.ShapeDtypeStruct((bs, n_heads * ch, t_pad), qkv.dtype),
        grid_spec=pltpu.PrefetchScalarGridSpec(
            num_scalar_prefetch=0,
            grid=(bs, n_groups, nq, nk),
            in_specs=[
                # q / k / v are channel-offset views into the same packed qkv:
                pl.BlockSpec(blk, lambda n, g, iq, ik: (n, g, iq)),
                pl.BlockSpec(blk, lambda n, g, iq, ik: (n, n_groups + g, ik)),
                pl.BlockSpec(blk, lambda n, g, iq, ik: (n, 2 * n_groups + g, ik)),
            ],
            out_specs=pl.BlockSpec(blk, lambda n, g, iq, ik: (n, g, iq)),
            scratch_shapes=[
                pltpu.VMEM((hb, 1, tile), jnp.float32),    # running max
                pltpu.VMEM((hb, 1, tile), jnp.float32),    # running sum
                pltpu.VMEM((hb, ch, tile), jnp.float32),   # output accumulator
            ],
        ),
        compiler_params=pltpu.CompilerParams(
            dimension_semantics=("parallel", "parallel", "parallel", "arbitrary"),
            vmem_limit_bytes=64 * 1024 * 1024,
        ),
        cost_estimate=cost,
    )(qkv_p, qkv_p, qkv_p)

    if need_mask:
        out = out[:, :, :length]
    return out


def _reference(qkv, n_heads):
    bs, width, length = qkv.shape
    ch = width // (3 * n_heads)
    q, k, v = jnp.split(qkv, 3, axis=1)
    scale = 1.0 / math.sqrt(math.sqrt(ch))
    q = (q.reshape(bs * n_heads, ch, length) * scale).astype(jnp.float32)
    k = (k.reshape(bs * n_heads, ch, length) * scale).astype(jnp.float32)
    v = v.reshape(bs * n_heads, ch, length).astype(jnp.float32)
    w = jnp.einsum("bct,bcs->bts", q, k)
    w = jax.nn.softmax(w, axis=-1)
    a = jnp.einsum("bts,bcs->bct", w, v)
    return a.reshape(bs, n_heads * ch, length).astype(qkv.dtype)


if __name__ == "__main__":
    key = jax.random.PRNGKey(0)

    # Case 1: small shapes consistent with the module: N=2, H=2, C=8, T=16
    # (exercises padding + key masking, single k tile).
    N, H, C, T = 2, 2, 8, 16
    qkv = jax.random.normal(key, (N, 3 * H * C, T), dtype=jnp.float32)
    out = jax.block_until_ready(qkv_attention(qkv, n_heads=H))
    ref = _reference(qkv, n_heads=H)
    assert out.shape == (N, H * C, T)
    assert jnp.allclose(out, ref, atol=1e-4, rtol=1e-4), float(
        jnp.max(jnp.abs(out - ref)))

    # Case 2: exercises the multi-tile flash path (nq = nk = 3) plus masking.
    N2, H2, C2, T2 = 2, 4, 16, 380
    qkv2 = jax.random.normal(jax.random.PRNGKey(1),
                             (N2, 3 * H2 * C2, T2), dtype=jnp.float32)
    out2 = jax.block_until_ready(qkv_attention(qkv2, n_heads=H2))
    ref2 = _reference(qkv2, n_heads=H2)
    assert out2.shape == (N2, H2 * C2, T2)
    assert jnp.allclose(out2, ref2, atol=1e-4, rtol=1e-4), float(
        jnp.max(jnp.abs(out2 - ref2)))

    print("KERNEL_OK")
</pallas_src>

<mosaic_0001>
module attributes {stable_mosaic.version = 11 : i64} {
  func.func @_flash_qkv_kernel(%arg0: i32, %arg1: i32, %arg2: i32, %arg3: i32, %arg4: memref<1x16x128xf32, #tpu.memory_space<vmem>>, %arg5: memref<1x16x128xf32, #tpu.memory_space<vmem>>, %arg6: memref<1x16x128xf32, #tpu.memory_space<vmem>>, %arg7: memref<1x16x128xf32, #tpu.memory_space<vmem>>, %arg8: memref<2x1x128xf32, #tpu.memory_space<vmem>>, %arg9: memref<2x1x128xf32, #tpu.memory_space<vmem>>, %arg10: memref<2x8x128xf32, #tpu.memory_space<vmem>>) attributes {dimension_semantics = [#tpu.dimension_semantics<parallel>, #tpu.dimension_semantics<parallel>, #tpu.dimension_semantics<parallel>, #tpu.dimension_semantics<arbitrary>], iteration_bounds = array<i64: 2, 1, 1, 1>, scalar_prefetch = 0 : i64, scratch_operands = 3 : i64, tpu.core_type = #tpu.core_type<tc>, window_params = [{transform_indices = @transform_0, window_bounds = array<i64: 1, 16, 128>}, {transform_indices = @transform_1, window_bounds = array<i64: 1, 16, 128>}, {transform_indices = @transform_2, window_bounds = array<i64: 1, 16, 128>}, {transform_indices = @transform_3, window_bounds = array<i64: 1, 16, 128>}]} {
    %c0_i32 = arith.constant 0 : i32
    %0 = arith.cmpi eq, %arg3, %c0_i32 : i32
    %1 = arith.extui %0 : i1 to i32
    %c0_i32_0 = arith.constant 0 : i32
    %2 = arith.cmpi ne, %1, %c0_i32_0 : i32
    scf.if %2 {
      %cst_34 = arith.constant 0xFF800000 : f32
      %48 = vector.broadcast %cst_34 : f32 to vector<2x1x128xf32>
      %c0_35 = arith.constant 0 : index
      %c0_36 = arith.constant 0 : index
      %c0_37 = arith.constant 0 : index
      %49 = vector.load %arg8[%c0_35, %c0_36, %c0_37] : memref<2x1x128xf32, #tpu.memory_space<vmem>>, vector<2x1x128xf32>
      tpu.vector_store %arg8[%c0_35, %c0_36, %c0_37], %48 {strides = array<i32>} : memref<2x1x128xf32, #tpu.memory_space<vmem>>, vector<2x1x128xf32>,
      %cst_38 = arith.constant 0.000000e+00 : f32
      %50 = vector.broadcast %cst_38 : f32 to vector<2x1x128xf32>
      %c0_39 = arith.constant 0 : index
      %c0_40 = arith.constant 0 : index
      %c0_41 = arith.constant 0 : index
      %51 = vector.load %arg9[%c0_39, %c0_40, %c0_41] : memref<2x1x128xf32, #tpu.memory_space<vmem>>, vector<2x1x128xf32>
      tpu.vector_store %arg9[%c0_39, %c0_40, %c0_41], %50 {strides = array<i32>} : memref<2x1x128xf32, #tpu.memory_space<vmem>>, vector<2x1x128xf32>,
      %cst_42 = arith.constant 0.000000e+00 : f32
      %52 = vector.broadcast %cst_42 : f32 to vector<2x8x128xf32>
      %c0_43 = arith.constant 0 : index
      %c0_44 = arith.constant 0 : index
      %c0_45 = arith.constant 0 : index
      %53 = vector.load %arg10[%c0_43, %c0_44, %c0_45] : memref<2x8x128xf32, #tpu.memory_space<vmem>>, vector<2x8x128xf32>
      tpu.vector_store %arg10[%c0_43, %c0_44, %c0_45], %52 {strides = array<i32>} : memref<2x8x128xf32, #tpu.memory_space<vmem>>, vector<2x8x128xf32>,
    } else {
    }
    %c0 = arith.constant 0 : index
    %c0_1 = arith.constant 0 : index
    %c0_2 = arith.constant 0 : index
    %3 = vector.load %arg4[%c0, %c0_1, %c0_2] : memref<1x16x128xf32, #tpu.memory_space<vmem>>, vector<1x16x128xf32>
    %4 = vector.shape_cast %3 : vector<1x16x128xf32> to vector<16x128xf32>
    %5 = vector.shape_cast %4 : vector<16x128xf32> to vector<2x8x128xf32>
    %cst = arith.constant 0.353553385 : f32
    %6 = vector.broadcast %cst : f32 to vector<2x8x128xf32>
    %7 = arith.mulf %5, %6 : vector<2x8x128xf32>
    %c0_3 = arith.constant 0 : index
    %c0_4 = arith.constant 0 : index
    %c0_5 = arith.constant 0 : index
    %8 = vector.load %arg5[%c0_3, %c0_4, %c0_5] : memref<1x16x128xf32, #tpu.memory_space<vmem>>, vector<1x16x128xf32>
    %9 = vector.shape_cast %8 : vector<1x16x128xf32> to vector<16x128xf32>
    %10 = vector.shape_cast %9 : vector<16x128xf32> to vector<2x8x128xf32>
    %c0_6 = arith.constant 0 : index
    %c0_7 = arith.constant 0 : index
    %c0_8 = arith.constant 0 : index
    %11 = vector.load %arg6[%c0_6, %c0_7, %c0_8] : memref<1x16x128xf32, #tpu.memory_space<vmem>>, vector<1x16x128xf32>
    %12 = vector.shape_cast %11 : vector<1x16x128xf32> to vector<16x128xf32>
    %13 = vector.shape_cast %12 : vector<16x128xf32> to vector<2x8x128xf32>
    %cst_9 = arith.constant dense<0.000000e+00> : vector<2x128x128xf32>
    %14 = tpu.matmul %10, %7, %cst_9 {dimension_numbers = #tpu.dot_dimension_numbers<[1], [1], [2], [2], [0, 0, 0, 2, 1, 2], [0], [0]>} : vector<2x8x128xf32>, vector<2x8x128xf32>, vector<2x128x128xf32> -> vector<2x128x128xf32>
    %c0_10 = arith.constant 0 : index
    %c0_11 = arith.constant 0 : index
    %c0_12 = arith.constant 0 : index
    %15 = vector.load %arg8[%c0_10, %c0_11, %c0_12] : memref<2x1x128xf32, #tpu.memory_space<vmem>>, vector<2x1x128xf32>
    %cst_13 = arith.constant dense<0xFF800000> : vector<2x128xf32>
    %16 = vector.multi_reduction <maximumf>, %14, %cst_13 [1] : vector<2x128x128xf32> to vector<2x128xf32>
    %17 = vector.shape_cast %16 : vector<2x128xf32> to vector<2x1x128xf32>
    %18 = arith.maximumf %15, %17 : vector<2x1x128xf32>
    %19 = arith.subf %15, %18 : vector<2x1x128xf32>
    %20 = math.exp %19 : vector<2x1x128xf32>
    %21 = vector.broadcast %18 : vector<2x1x128xf32> to vector<2x128x128xf32>
    %22 = arith.subf %14, %21 : vector<2x128x128xf32>
    %23 = math.exp %22 : vector<2x128x128xf32>
    %c128_i32 = arith.constant 128 : i32
    %24 = arith.muli %arg3, %c128_i32 : i32
    %25 = tpu.iota {dimensions = array<i32: 1>} : vector<2x128x128xi32>
    %26 = vector.broadcast %24 : i32 to vector<2x128x128xi32>
    %27 = arith.addi %26, %25 : vector<2x128x128xi32>
    %c16_i32 = arith.constant 16 : i32
    %28 = vector.broadcast %c16_i32 : i32 to vector<2x128x128xi32>
    %29 = arith.cmpi slt, %27, %28 : vector<2x128x128xi32>
    %cst_14 = arith.constant 0.000000e+00 : f32
    %30 = vector.broadcast %cst_14 : f32 to vector<2x128x128xf32>
    %31 = arith.select %29, %23, %30 : vector<2x128x128xi1>, vector<2x128x128xf32>
    %c0_15 = arith.constant 0 : index
    %c0_16 = arith.constant 0 : index
    %c0_17 = arith.constant 0 : index
    %32 = vector.load %arg9[%c0_15, %c0_16, %c0_17] : memref<2x1x128xf32, #tpu.memory_space<vmem>>, vector<2x1x128xf32>
    %33 = arith.mulf %20, %32 : vector<2x1x128xf32>
    %cst_18 = arith.constant dense<0.000000e+00> : vector<2x128xf32>
    %34 = vector.multi_reduction <add>, %31, %cst_18 [1] : vector<2x128x128xf32> to vector<2x128xf32>
    %35 = vector.shape_cast %34 : vector<2x128xf32> to vector<2x1x128xf32>
    %36 = arith.addf %33, %35 : vector<2x1x128xf32>
    %c0_19 = arith.constant 0 : index
    %c0_20 = arith.constant 0 : index
    %c0_21 = arith.constant 0 : index
    %37 = vector.load %arg9[%c0_19, %c0_20, %c0_21] : memref<2x1x128xf32, #tpu.memory_space<vmem>>, vector<2x1x128xf32>
    tpu.vector_store %arg9[%c0_19, %c0_20, %c0_21], %36 {strides = array<i32>} : memref<2x1x128xf32, #tpu.memory_space<vmem>>, vector<2x1x128xf32>,
    %cst_22 = arith.constant dense<0.000000e+00> : vector<2x8x128xf32>
    %38 = tpu.matmul %13, %31, %cst_22 {dimension_numbers = #tpu.dot_dimension_numbers<[2], [1], [1], [2], [0, 0, 0, 1, 1, 2], [0], [0]>} : vector<2x8x128xf32>, vector<2x128x128xf32>, vector<2x8x128xf32> -> vector<2x8x128xf32>
    %c0_23 = arith.constant 0 : index
    %c0_24 = arith.constant 0 : index
    %c0_25 = arith.constant 0 : index
    %39 = vector.load %arg10[%c0_23, %c0_24, %c0_25] : memref<2x8x128xf32, #tpu.memory_space<vmem>>, vector<2x8x128xf32>
    %40 = vector.broadcast %20 : vector<2x1x128xf32> to vector<2x8x128xf32>
    %41 = arith.mulf %40, %39 : vector<2x8x128xf32>
    %42 = arith.addf %41, %38 : vector<2x8x128xf32>
    %c0_26 = arith.constant 0 : index
    %c0_27 = arith.constant 0 : index
    %c0_28 = arith.constant 0 : index
    %43 = vector.load %arg10[%c0_26, %c0_27, %c0_28] : memref<2x8x128xf32, #tpu.memory_space<vmem>>, vector<2x8x128xf32>
    tpu.vector_store %arg10[%c0_26, %c0_27, %c0_28], %42 {strides = array<i32>} : memref<2x8x128xf32, #tpu.memory_space<vmem>>, vector<2x8x128xf32>,
    %c0_29 = arith.constant 0 : index
    %c0_30 = arith.constant 0 : index
    %c0_31 = arith.constant 0 : index
    %44 = vector.load %arg8[%c0_29, %c0_30, %c0_31] : memref<2x1x128xf32, #tpu.memory_space<vmem>>, vector<2x1x128xf32>
    tpu.vector_store %arg8[%c0_29, %c0_30, %c0_31], %18 {strides = array<i32>} : memref<2x1x128xf32, #tpu.memory_space<vmem>>, vector<2x1x128xf32>,
    %c0_i32_32 = arith.constant 0 : i32
    %45 = arith.cmpi eq, %arg3, %c0_i32_32 : i32
    %46 = arith.extui %45 : i1 to i32
    %c0_i32_33 = arith.constant 0 : i32
    %47 = arith.cmpi ne, %46, %c0_i32_33 : i32
    scf.if %47 {
      %c0_34 = arith.constant 0 : index
      %c0_35 = arith.constant 0 : index
      %c0_36 = arith.constant 0 : index
      %48 = vector.load %arg9[%c0_34, %c0_35, %c0_36] : memref<2x1x128xf32, #tpu.memory_space<vmem>>, vector<2x1x128xf32>
      %cst_37 = arith.constant 1.000000e+00 : f32
      %49 = vector.broadcast %cst_37 : f32 to vector<2x1x128xf32>
      %50 = arith.divf %49, %48 : vector<2x1x128xf32>
      %c0_38 = arith.constant 0 : index
      %c0_39 = arith.constant 0 : index
      %c0_40 = arith.constant 0 : index
      %51 = vector.load %arg10[%c0_38, %c0_39, %c0_40] : memref<2x8x128xf32, #tpu.memory_space<vmem>>, vector<2x8x128xf32>
      %52 = vector.broadcast %50 : vector<2x1x128xf32> to vector<2x8x128xf32>
      %53 = arith.mulf %51, %52 : vector<2x8x128xf32>
      %54 = vector.shape_cast %53 : vector<2x8x128xf32> to vector<16x128xf32>
      %c0_41 = arith.constant 0 : index
      %c0_42 = arith.constant 0 : index
      %c0_43 = arith.constant 0 : index
      %55 = vector.load %arg7[%c0_41, %c0_42, %c0_43] : memref<1x16x128xf32, #tpu.memory_space<vmem>>, vector<1x16x128xf32>
      %56 = vector.shape_cast %55 : vector<1x16x128xf32> to vector<16x128xf32>
      %57 = vector.shape_cast %54 : vector<16x128xf32> to vector<1x16x128xf32>
      tpu.vector_store %arg7[%c0_41, %c0_42, %c0_43], %57 {strides = array<i32>} : memref<1x16x128xf32, #tpu.memory_space<vmem>>, vector<1x16x128xf32>,
    } else {
    }
    return
  }
  func.func @transform_0(%arg0: i32, %arg1: i32, %arg2: i32, %arg3: i32) -> (i32, i32, i32) {
    %c0_i32 = arith.constant 0 : i32
    return %arg0, %arg1, %arg2 : i32, i32, i32
  }
  func.func @transform_1(%arg0: i32, %arg1: i32, %arg2: i32, %arg3: i32) -> (i32, i32, i32) {
    %c1_i32 = arith.constant 1 : i32
    %0 = arith.addi %c1_i32, %arg1 : i32
    %c0_i32 = arith.constant 0 : i32
    return %arg0, %0, %arg3 : i32, i32, i32
  }
  func.func @transform_2(%arg0: i32, %arg1: i32, %arg2: i32, %arg3: i32) -> (i32, i32, i32) {
    %c2_i32 = arith.constant 2 : i32
    %0 = arith.addi %c2_i32, %arg1 : i32
    %c0_i32 = arith.constant 0 : i32
    return %arg0, %0, %arg3 : i32, i32, i32
  }
  func.func @transform_3(%arg0: i32, %arg1: i32, %arg2: i32, %arg3: i32) -> (i32, i32, i32) {
    %c0_i32 = arith.constant 0 : i32
    return %arg0, %arg1, %arg2 : i32, i32, i32
  }
}

</mosaic_0001>

<llo_original>
// kernel: tpu_custom_call.1
$region0: #{tpu_custom_call.1}
  #allocation0 [shape = 'u32[]', space=smem, size = 0x4, offset = 0x4, fixed_abs, tag = 'smem constant byte address 0x4 - core index']
  #allocation1 [shape = 'u32[144,128]{1,0:T(1,128)}', space=vmem, size = 0x12000, scoped, tag = 'internal scratch']
  #allocation2 [shape = 'f32[2,1,128]{2,1,0:T(1,128)}', space=vmem, size = 0x400, scoped, tag = 'scratch operand']
  #allocation3 [shape = 'f32[2,1,128]{2,1,0:T(1,128)}', space=vmem, size = 0x400, scoped, tag = 'scratch operand']
  #allocation4 [shape = 'f32[2,8,128]{2,1,0:T(8,128)}', space=vmem, size = 0x2000, scoped, tag = 'scratch operand']
  %s0 = inlined_call_operand.hbm [shape: f32[2,48,128], index: 0, kind: input, shape index: {}]
  %s1 = inlined_call_operand.hbm [shape: f32[2,48,128], index: 1, kind: input, shape index: {}]
  %s2 = inlined_call_operand.hbm [shape: f32[2,48,128], index: 2, kind: input, shape index: {}]
  %s3 = inlined_call_operand.hbm [shape: f32[2,16,128], index: 3, kind: output, shape index: {}]
  %s4 = sld [smem:[#allocation0]]
  $region65: #{tpu_custom_call.1} parent=0
    _
  %s6 = ssub.s32 1, %s4
  %s7 = scalar_select 0, %s6, %s4
  $region1: #{tpu_custom_call.1} parent=0
    #allocation5 [shape = 'u8[16384]{0}', space=vmem, size = 0x4000, scoped, tag = 'input window, operand 0']
    #allocation6 [shape = 's32[2]{0}', space=sflag, size = 0x8, scoped, tag = 'scoped memory for tpu_custom_call.1']
    #allocation7 [shape = 's32[2]{0}', space=sflag, size = 0x8, scoped, tag = 'scoped memory for tpu_custom_call.1']
    #allocation8 [shape = 'u8[16384]{0}', space=vmem, size = 0x4000, scoped, tag = 'input window, operand 1']
    #allocation9 [shape = 's32[2]{0}', space=sflag, size = 0x8, scoped, tag = 'scoped memory for tpu_custom_call.1']
    #allocation10 [shape = 'u8[16384]{0}', space=vmem, size = 0x4000, scoped, tag = 'input window, operand 2']
    #allocation11 [shape = 'u8[16384]{0}', space=vmem, size = 0x4000, scoped, tag = 'output window, operand 0']
    %8 = vsyncpa [#allocation6], 0
    %s9 = scalar_lea.sflag [#allocation6], 1
    %10 = vsyncpa %s9, 0
    %11 = vsyncpa [#allocation9], 0
    %s12 = scalar_lea.sflag [#allocation9], 1
    %13 = vsyncpa %s12, 0
    %14 = vsyncpa [#allocation7], 0
    %s15 = scalar_lea.sflag [#allocation7], 1
    %16 = vsyncpa %s15, 0
    loop: start=0, step=1, limit=4
    $region2: #{tpu_custom_call.1} parent=1 // loop_pre_header
      _
    $region3: #{tpu_custom_call.1} parent=1 // loop_header
      %s18 = sphi 0, %s22
      %p19 = scmp.ge.s32.totalorder %s18, 4
      %s25 = sphi 0, %s51
      %s26 = sphi 0, %s47
      %s27 = sphi 0, %s43
      %s28 = sphi 0, %s39
      %s29 = sphi 0, %s25
      %s30 = sphi 0, %s26
      %s31 = sphi 0, %s27
      %s32 = sphi 0, %s28
      %s33 = sphi 0, %s29
      %s34 = sphi 0, %s30
      %s35 = sphi 0, %s31
      %s36 = sphi 0, %s32
      %s58 = sphi 0, %s60
      %s61 = sphi 0, %s58
      %s62 = sphi 0, %s61
      %s78 = sphi 0, %s62
      %s90 = sphi 0, %s92
      %s93 = sphi 0, %s90
      %s94 = sphi 0, %s93
      %s110 = sphi 0, %s94
      %s122 = sphi 0, %s124
      %s125 = sphi 0, %s122
      %s126 = sphi 0, %s125
      %s142 = sphi 0, %s126
      %s152 = sphi 0, %s154
      %s155 = sphi 0, %s152
      %s156 = sphi 0, %s155
      %s172 = sphi 0, %s156
    $region4: #{tpu_custom_call.1} parent=1 // loop_header_branch
      %21 = sbr.rel (%p19) target = $region8
    $region5: #{tpu_custom_call.1} parent=1 // loop_body
      %s23 = ssub.s32 %s18, 1
      %s24 = ssub.s32 %s18, 2
      %s37 = sadd.s32 1, %s28
      %p38 = scmp.ge.s32.totalorder %s37, 1
      %s39 = scalar_select %p38, 0, %s37
      %s40 = sadd.s32 1, %s27
      %s41 = scalar_select %p38, %s40, %s27
      %p42 = scmp.ge.s32.totalorder %s41, 1
      %s43 = scalar_select %p42, 0, %s41
      %s44 = sadd.s32 1, %s26
      %s45 = scalar_select %p42, %s44, %s26
      %p46 = scmp.ge.s32.totalorder %s45, 1
      %s47 = scalar_select %p46, 0, %s45
      %s48 = sadd.s32 1, %s25
      %s49 = scalar_select %p46, %s48, %s25
      %p50 = scmp.ge.s32.totalorder %s49, 2
      %s51 = scalar_select %p50, 0, %s49
      %s52 = ssub.s32 %s25, %s51
      %s53 = ssub.s32 %s26, %s47
      %s54 = sor.u32 %s52, %s53
      %s55 = ssub.s32 %s27, %s43
      %s56 = sor.u32 %s54, %s55
      %p57 = scmp.eq.s32.totalorder %s56, 0
      %s59 = sadd.s32 %s58, 1
      %s60 = scalar_select %p57, %s58, %s59
      %p63 = pneg %p57
      %p64 = scmp.eq.s32.totalorder %s18, 1
      %p65 = por %p63, %p64
      %p66 = scmp.ne.s32.totalorder %s58, %s61
      %p67 = scmp.eq.s32.totalorder %s18, 0
      %p68 = por %p66, %p67
      %p69 = scmp.ne.s32.totalorder %s58, %s61
      %p70 = scmp.eq.s32.totalorder %s23, 1
      %p71 = por %p69, %p70
      %p72 = scmp.ne.s32.totalorder %s61, %s62
      %p73 = scmp.eq.s32.totalorder %s23, 0
      %p74 = por %p72, %p73
      %p75 = scmp.ne.s32.totalorder %s61, %s62
      %p76 = scmp.eq.s32.totalorder %s24, 1
      %p77 = por %p75, %p76
      %p79 = scmp.ne.s32.totalorder %s62, %s78
      %p80 = scmp.eq.s32.totalorder %s24, 0
      %p81 = por %p79, %p80
      %s82 = sadd.s32 %s26, 1
      %s83 = sadd.s32 %s47, 1
      %s84 = ssub.s32 %s25, %s51
      %s85 = ssub.s32 %s82, %s83
      %s86 = sor.u32 %s84, %s85
      %s87 = ssub.s32 %s28, %s39
      %s88 = sor.u32 %s86, %s87
      %p89 = scmp.eq.s32.totalorder %s88, 0
      %s91 = sadd.s32 %s90, 1
      %s92 = scalar_select %p89, %s90, %s91
      %p95 = pneg %p89
      %p96 = scmp.eq.s32.totalorder %s18, 1
      %p97 = por %p95, %p96
      %p98 = scmp.ne.s32.totalorder %s90, %s93
      %p99 = scmp.eq.s32.totalorder %s18, 0
      %p100 = por %p98, %p99
      %p101 = scmp.ne.s32.totalorder %s90, %s93
      %p102 = scmp.eq.s32.totalorder %s23, 1
      %p103 = por %p101, %p102
      %p104 = scmp.ne.s32.totalorder %s93, %s94
      %p105 = scmp.eq.s32.totalorder %s23, 0
      %p106 = por %p104, %p105
      %p107 = scmp.ne.s32.totalorder %s93, %s94
      %p108 = scmp.eq.s32.totalorder %s24, 1
      %p109 = por %p107, %p108
      %p111 = scmp.ne.s32.totalorder %s94, %s110
      %p112 = scmp.eq.s32.totalorder %s24, 0
      %p113 = por %p111, %p112
      %s114 = sadd.s32 %s26, 2
      %s115 = sadd.s32 %s47, 2
      %s116 = ssub.s32 %s25, %s51
      %s117 = ssub.s32 %s114, %s115
      %s118 = sor.u32 %s116, %s117
      %s119 = ssub.s32 %s28, %s39
      %s120 = sor.u32 %s118, %s119
      %p121 = scmp.eq.s32.totalorder %s120, 0
      %s123 = sadd.s32 %s122, 1
      %s124 = scalar_select %p121, %s122, %s123
      %p127 = pneg %p121
      %p128 = scmp.eq.s32.totalorder %s18, 1
      %p129 = por %p127, %p128
      %p130 = scmp.ne.s32.totalorder %s122, %s125
      %p131 = scmp.eq.s32.totalorder %s18, 0
      %p132 = por %p130, %p131
      %p133 = scmp.ne.s32.totalorder %s122, %s125
      %p134 = scmp.eq.s32.totalorder %s23, 1
      %p135 = por %p133, %p134
      %p136 = scmp.ne.s32.totalorder %s125, %s126
      %p137 = scmp.eq.s32.totalorder %s23, 0
      %p138 = por %p136, %p137
      %p139 = scmp.ne.s32.totalorder %s125, %s126
      %p140 = scmp.eq.s32.totalorder %s24, 1
      %p141 = por %p139, %p140
      %p143 = scmp.ne.s32.totalorder %s126, %s142
      %p144 = scmp.eq.s32.totalorder %s24, 0
      %p145 = por %p143, %p144
      %s146 = ssub.s32 %s25, %s51
      %s147 = ssub.s32 %s26, %s47
      %s148 = sor.u32 %s146, %s147
      %s149 = ssub.s32 %s27, %s43
      %s150 = sor.u32 %s148, %s149
      %p151 = scmp.eq.s32.totalorder %s150, 0
      %s153 = sadd.s32 %s152, 1
      %s154 = scalar_select %p151, %s152, %s153
      %p157 = pneg %p151
      %p158 = scmp.eq.s32.totalorder %s18, 1
      %p159 = por %p157, %p158
      %p160 = scmp.ne.s32.totalorder %s152, %s155
      %p161 = scmp.eq.s32.totalorder %s18, 0
      %p162 = por %p160, %p161
      %p163 = scmp.ne.s32.totalorder %s152, %s155
      %p164 = scmp.eq.s32.totalorder %s23, 1
      %p165 = por %p163, %p164
      %p166 = scmp.ne.s32.totalorder %s155, %s156
      %p167 = scmp.eq.s32.totalorder %s23, 0
      %p168 = por %p166, %p167
      %p169 = scmp.ne.s32.totalorder %s155, %s156
      %p170 = scmp.eq.s32.totalorder %s24, 1
      %p171 = por %p169, %p170
      %p173 = scmp.ne.s32.totalorder %s156, %s172
      %p174 = scmp.eq.s32.totalorder %s24, 0
      %p175 = por %p173, %p174
      %p176 = scmp.le.s32.totalorder 1, %s18
      %p177 = scmp.lt.s32.totalorder %s18, 3
      %p178 = pnand %p176, %p177
      %p179 = pneg %p178
      // Predicated region
      $region9: #{tpu_custom_call.1} parent=5 // pred_check
        _
      $region10: #{tpu_custom_call.1} parent=5 // pred_check_branch
        %181 = sbr.rel (%p178) target = $region12
      $region11: #{tpu_custom_call.1} parent=5 // pred_region
        %s182 = ssub.s32 %s18, 1
      $region12: #{tpu_custom_call.1} parent=5 // pred_fallthru
        _
      %p183 = scmp.lt.s32.totalorder %s18, 2
      // Predicated region
      $region13: #{tpu_custom_call.1} parent=5 // pred_check
        %p184 = pneg %p183
      $region14: #{tpu_custom_call.1} parent=5 // pred_check_branch
        %186 = sbr.rel (%p184) target = $region16
      $region15: #{tpu_custom_call.1} parent=5 // pred_region
        // Predicated region
        $region17: #{tpu_custom_call.1} parent=15 // pred_check
          %p187 = pneg %p68
        $region18: #{tpu_custom_call.1} parent=15 // pred_check_branch
          %189 = sbr.rel (%p187) target = $region20
        $region19: #{tpu_custom_call.1} parent=15 // pred_region
          %s190 = sand.u32 %s58, 1
          %s191 = scalar_lea.sflag [#allocation6], %s190
          %s192 = sand.u32 %s58, 1
          %s193 = smul.addr %s192, 16
          %s194 = scalar_lea.vmem [#allocation5], %s193
          %s195 = smul.u32 2, %s26
          %s197 = ssub.s32 256, 256
          %198 = vsyncadd %s191, %s197
          %s199 = sadd.s32 %s27, %s195
          %s200 = smul.addr %s25, 6
          %s201 = sadd.s32 %s199, %s200
          %s202 = smul.addr %s201, 128
          %s203 = scalar_lea.hbm %s0, %s202
          %s204 = sshll.u32 %s194, 4
          %s205 = int_to_ptr.vmem [resolvable:$true] %s204
          %210 = dma.hbm_to_vmem [thread:$0]  %s203, 256, %s205, %s191, 128, 128, 8
        $region20: #{tpu_custom_call.1} parent=15 // pred_fallthru
          _
        // Predicated region
        $region21: #{tpu_custom_call.1} parent=15 // pred_check
          %p211 = pneg %p100
        $region22: #{tpu_custom_call.1} parent=15 // pred_check_branch
          %213 = sbr.rel (%p211) target = $region24
        $region23: #{tpu_custom_call.1} parent=15 // pred_region
          %s214 = sand.u32 %s18, 1
          %s215 = scalar_lea.sflag [#allocation9], %s214
          %s216 = sand.u32 %s90, 1
          %s217 = smul.addr %s216, 16
          %s218 = scalar_lea.vmem [#allocation8], %s217
          %s219 = sadd.s32 %s26, 1
          %s220 = smul.u32 2, %s219
          %s222 = ssub.s32 256, 256
          %223 = vsyncadd %s215, %s222
          %s224 = sadd.s32 %s28, %s220
          %s225 = smul.addr %s25, 6
          %s226 = sadd.s32 %s224, %s225
          %s227 = smul.addr %s226, 128
          %s228 = scalar_lea.hbm %s1, %s227
          %s229 = sshll.u32 %s218, 4
          %s230 = int_to_ptr.vmem [resolvable:$true] %s229
          %235 = dma.hbm_to_vmem [thread:$0]  %s228, 256, %s230, %s215, 128, 128, 8
        $region24: #{tpu_custom_call.1} parent=15 // pred_fallthru
          _
        // Predicated region
        $region25: #{tpu_custom_call.1} parent=15 // pred_check
          %p236 = pneg %p132
        $region26: #{tpu_custom_call.1} parent=15 // pred_check_branch
          %238 = sbr.rel (%p236) target = $region28
        $region27: #{tpu_custom_call.1} parent=15 // pred_region
          %s239 = sand.u32 %s18, 1
          %s240 = scalar_lea.sflag [#allocation9], %s239
          %s241 = sand.u32 %s122, 1
          %s242 = smul.addr %s241, 16
          %s243 = scalar_lea.vmem [#allocation10], %s242
          %s244 = sadd.s32 %s26, 2
          %s245 = smul.u32 2, %s244
          %s247 = ssub.s32 256, 256
          %248 = vsyncadd %s240, %s247
          %s249 = sadd.s32 %s28, %s245
          %s250 = smul.addr %s25, 6
          %s251 = sadd.s32 %s249, %s250
          %s252 = smul.addr %s251, 128
          %s253 = scalar_lea.hbm %s2, %s252
          %s254 = sshll.u32 %s243, 4
          %s255 = int_to_ptr.vmem [resolvable:$true] %s254
          %260 = dma.hbm_to_vmem [thread:$0]  %s253, 256, %s255, %s240, 128, 128, 8
        $region28: #{tpu_custom_call.1} parent=15 // pred_fallthru
          _
      $region16: #{tpu_custom_call.1} parent=5 // pred_fallthru
        _
      %p261 = scmp.le.s32.totalorder 1, %s18
      %p262 = scmp.lt.s32.totalorder %s18, 3
      %p263 = pnand %p261, %p262
      %p264 = pneg %p263
      // Predicated region
      $region29: #{tpu_custom_call.1} parent=5 // pred_check
        _
      $region30: #{tpu_custom_call.1} parent=5 // pred_check_branch
        %266 = sbr.rel (%p263) target = $region32
      $region31: #{tpu_custom_call.1} parent=5 // pred_region
        %s267 = ssub.s32 %s18, 1
        %s268 = sand.u32 %s61, 1
        %s269 = scalar_lea.sflag [#allocation6], %s268
        %s270 = sand.u32 %s61, 1
        %s271 = smul.addr %s270, 16
        %s272 = scalar_lea.vmem [#allocation5], %s271
        // Predicated region
        $region33: #{tpu_custom_call.1} parent=31 // pred_check
          %p273 = pneg %p74
        $region34: #{tpu_custom_call.1} parent=31 // pred_check_branch
          %275 = sbr.rel (%p273) target = $region36
        $region35: #{tpu_custom_call.1} parent=31 // pred_region
          %276 = dma.done %s269, 256
        $region36: #{tpu_custom_call.1} parent=31 // pred_fallthru
          _
        %s277 = sand.u32 %s23, 1
        %s278 = scalar_lea.sflag [#allocation9], %s277
        %s279 = sand.u32 %s93, 1
        %s280 = smul.addr %s279, 16
        %s281 = scalar_lea.vmem [#allocation8], %s280
        // Predicated region
        $region37: #{tpu_custom_call.1} parent=31 // pred_check
          %p282 = pneg %p106
        $region38: #{tpu_custom_call.1} parent=31 // pred_check_branch
          %284 = sbr.rel (%p282) target = $region40
        $region39: #{tpu_custom_call.1} parent=31 // pred_region
          %285 = dma.done %s278, 256
        $region40: #{tpu_custom_call.1} parent=31 // pred_fallthru
          _
        %s286 = sand.u32 %s23, 1
        %s287 = scalar_lea.sflag [#allocation9], %s286
        %s288 = sand.u32 %s125, 1
        %s289 = smul.addr %s288, 16
        %s290 = scalar_lea.vmem [#allocation10], %s289
        // Predicated region
        $region41: #{tpu_custom_call.1} parent=31 // pred_check
          %p291 = pneg %p138
        $region42: #{tpu_custom_call.1} parent=31 // pred_check_branch
          %293 = sbr.rel (%p291) target = $region44
        $region43: #{tpu_custom_call.1} parent=31 // pred_region
          %294 = dma.done %s287, 256
        $region44: #{tpu_custom_call.1} parent=31 // pred_fallthru
          _
        %s295 = sand.u32 %s61, 1
        %s296 = scalar_lea.sflag [#allocation6], %s295
        %s297 = sand.u32 %s61, 1
        %s298 = smul.addr %s297, 16
        %s299 = scalar_lea.vmem [#allocation5], %s298
        %p300 = pneg %p74
        %p301 = pneg %p71
        %s302 = sand.u32 %s23, 1
        %s303 = scalar_lea.sflag [#allocation9], %s302
        %s304 = sand.u32 %s93, 1
        %s305 = smul.addr %s304, 16
        %s306 = scalar_lea.vmem [#allocation8], %s305
        %p307 = pneg %p106
        %p308 = pneg %p103
        %s309 = sand.u32 %s23, 1
        %s310 = scalar_lea.sflag [#allocation9], %s309
        %s311 = sand.u32 %s125, 1
        %s312 = smul.addr %s311, 16
        %s313 = scalar_lea.vmem [#allocation10], %s312
        %p314 = pneg %p138
        %p315 = pneg %p135
        %p316 = pneg %p168
        %p317 = pneg %p165
        %s318 = sand.u32 %s155, 1
        %s319 = scalar_lea.sflag [#allocation7], %s318
        %s320 = sand.u32 %s155, 1
        %s321 = smul.addr %s320, 16
        %s322 = scalar_lea.vmem [#allocation11], %s321
        %s323 = smul.u32 2, %s30
        %s324 = sadd.s32 %s30, 1
        %s325 = smul.u32 2, %s324
        %s326 = sadd.s32 %s30, 2
        %s327 = smul.u32 2, %s326
        %s328 = smul.u32 2, %s30
        %p329 = scmp.eq.s32.totalorder %s32, 0
        // Predicated region
        $region45: #{tpu_custom_call.1} parent=31 // pred_check
          %p330 = pneg %p329
        $region46: #{tpu_custom_call.1} parent=31 // pred_check_branch
          %332 = sbr.rel (%p330) target = $region48
        $region47: #{tpu_custom_call.1} parent=31 // pred_region
          %333 = vst [vmem:[#allocation2] sm:$0x1] -inf
          %334 = vst [vmem:[#allocation2 + $0x1] sm:$0x1] -inf
          %335 = vst [vmem:[#allocation3] sm:$0x1] 0.0
          %336 = vst [vmem:[#allocation3 + $0x1] sm:$0x1] 0.0
          %337 = vst [vmem:[#allocation4] sm:$0xff] 0.0
          %338 = vst [vmem:[#allocation4 + $0x8] sm:$0xff] 0.0
        $region48: #{tpu_custom_call.1} parent=31 // pred_fallthru
          _
        %v339 = vld [vmem:[%s272] sm:$0xff]
        %v340 = vld [vmem:[%s272 + $0x8] sm:$0xff]
        %v341 = vmul.f32 %v339, 0.35355338
        %v342 = vmul.f32 %v340, 0.35355338
        %v343 = vld [vmem:[%s281] sm:$0xff]
        %v344 = vld [vmem:[%s281 + $0x8] sm:$0xff]
        %v345 = vld [vmem:[%s290] sm:$0xff]
        %v346 = vld [vmem:[%s290 + $0x8] sm:$0xff]
        %347 = vxpose.xlu0.b32.start [1/16] %v343, 128
        %348 = vxpose.xlu0.b32.cont [2/16] 0.0, 128
        %349 = vxpose.xlu0.b32.cont [3/16] 0.0, 128
        %350 = vxpose.xlu0.b32.cont [4/16] 0.0, 128
        %351 = vxpose.xlu0.b32.cont [5/16] 0.0, 128
        %352 = vxpose.xlu0.b32.cont [6/16] 0.0, 128
        %353 = vxpose.xlu0.b32.cont [7/16] 0.0, 128
        %354 = vxpose.xlu0.b32.cont [8/16] 0.0, 128
        %355 = vxpose.xlu0.b32.cont [9/16] 0.0, 128
        %356 = vxpose.xlu0.b32.cont [10/16] 0.0, 128
        %357 = vxpose.xlu0.b32.cont [11/16] 0.0, 128
        %358 = vxpose.xlu0.b32.cont [12/16] 0.0, 128
        %359 = vxpose.xlu0.b32.cont [13/16] 0.0, 128
        %360 = vxpose.xlu0.b32.cont [14/16] 0.0, 128
        %361 = vxpose.xlu0.b32.cont [15/16] 0.0, 128
        %362 = vxpose.xlu0.b32.end [16/16] 0.0, 128
        %v363 = vpop.trf.xlu0
        %v364 = vpop.trf.xlu0
        %v365 = vpop.trf.xlu0
        %v366 = vpop.trf.xlu0
        %v367 = vpop.trf.xlu0
        %v368 = vpop.trf.xlu0
        %v369 = vpop.trf.xlu0
        %v370 = vpop.trf.xlu0
        %v371 = vpop.trf.xlu0
        %v372 = vpop.trf.xlu0
        %v373 = vpop.trf.xlu0
        %v374 = vpop.trf.xlu0
        %v375 = vpop.trf.xlu0
        %v376 = vpop.trf.xlu0
        %v377 = vpop.trf.xlu0
        %v378 = vpop.trf.xlu0
        %vm379 = vcmask 64512
        %v381 = vsel %vm379, %v363, 0
        %v384 = vsel %vm379, %v364, 0
        %v387 = vsel %vm379, %v365, 0
        %v390 = vsel %vm379, %v366, 0
        %v393 = vsel %vm379, %v367, 0
        %v396 = vsel %vm379, %v368, 0
        %v399 = vsel %vm379, %v369, 0
        %v402 = vsel %vm379, %v370, 0
        %v405 = vsel %vm379, %v371, 0
        %v408 = vsel %vm379, %v372, 0
        %v411 = vsel %vm379, %v373, 0
        %v414 = vsel %vm379, %v374, 0
        %v417 = vsel %vm379, %v375, 0
        %v420 = vsel %vm379, %v376, 0
        %v423 = vsel %vm379, %v377, 0
        %v426 = vsel %vm379, %v378, 0
        %428 = vmatprep.subr.mxu0 0.0
        %429 = vmatpush1.msra.mxu0 %v341
        %430 = vmatprep.subr.mxu0 0.0
        %431 = vmatpush1.msra.mxu0 0.0
        %432 = vmatprep.subr.mxu0 0.0
        %433 = vmatpush1.msra.mxu0 0.0
        %434 = vmatprep.subr.mxu0 0.0
        %435 = vmatpush1.msra.mxu0 0.0
        %436 = vmatprep.subr.mxu0 0.0
        %437 = vmatpush1.msra.mxu0 0.0
        %438 = vmatprep.subr.mxu0 0.0
        %439 = vmatpush1.msra.mxu0 0.0
        %440 = vmatprep.subr.mxu0 0.0
        %441 = vmatpush1.msra.mxu0 0.0
        %442 = vmatprep.subr.mxu0 0.0
        %443 = vmatpush1.msra.mxu0 0.0
        %444 = vmatprep.subr.mxu0 0.0
        %445 = vmatpush1.msra.mxu0 0.0
        %446 = vmatprep.subr.mxu0 0.0
        %447 = vmatpush1.msra.mxu0 0.0
        %448 = vmatprep.subr.mxu0 0.0
        %449 = vmatpush1.msra.mxu0 0.0
        %450 = vmatprep.subr.mxu0 0.0
        %451 = vmatpush1.msra.mxu0 0.0
        %452 = vmatprep.subr.mxu0 0.0
        %453 = vmatpush1.msra.mxu0 0.0
        %454 = vmatprep.subr.mxu0 0.0
        %455 = vmatpush1.msra.mxu0 0.0
        %456 = vmatprep.subr.mxu0 0.0
        %457 = vmatpush1.msra.mxu0 0.0
        %458 = vmatprep.subr.mxu0 0.0
        %459 = vmatpush1.msra.mxu0 0.0
        %460 = vmatprep.subr.mxu0 0.0
        %461 = vmatpush1.msra.mxu0 0.0
        %462 = vmatprep.subr.mxu0 0.0
        %463 = vmatpush1.msra.mxu0 0.0
        %464 = vmatprep.subr.mxu0 0.0
        %465 = vmatpush1.msra.mxu0 0.0
        %466 = vmatprep.subr.mxu0 0.0
        %467 = vmatpush1.msra.mxu0 0.0
        %468 = vmatprep.subr.mxu0 0.0
        %469 = vmatpush1.msra.mxu0 0.0
        %470 = vmatprep.subr.mxu0 0.0
        %471 = vmatpush1.msra.mxu0 0.0
        %472 = vmatprep.subr.mxu0 0.0
        %473 = vmatpush1.msra.mxu0 0.0
        %474 = vmatprep.subr.mxu0 0.0
        %475 = vmatpush1.msra.mxu0 0.0
        %476 = vmatprep.subr.mxu0 0.0
        %477 = vmatpush1.msra.mxu0 0.0
        %478 = vmatprep.subr.mxu0 0.0
        %479 = vmatpush1.msra.mxu0 0.0
        %480 = vmatprep.subr.mxu0 0.0
        %481 = vmatpush1.msra.mxu0 0.0
        %482 = vmatprep.subr.mxu0 0.0
        %483 = vmatpush1.msra.mxu0 0.0
        %484 = vmatprep.subr.mxu0 0.0
        %485 = vmatpush1.msra.mxu0 0.0
        %486 = vmatprep.subr.mxu0 0.0
        %487 = vmatpush1.msra.mxu0 0.0
        %488 = vmatprep.subr.mxu0 0.0
        %489 = vmatpush1.msra.mxu0 0.0
        %490 = vmatprep.subr.mxu0 0.0
        %491 = vmatpush1.msra.mxu0 0.0
        %492 = vmatprep.mubr.f32.mxu0 0.0
        %493 = vmatmul.mubr.f32.gmra.mrb[0].mxu0 %v381
        %v494 = vpop.f32.mrb[0].mxu0
        %v495 = vadd.f32 0.0, %v494
        %v496 = vpop.f32.mrb[0].mxu0
        %497 = vmatprep.mubr.f32.mxu0 0.0
        %498 = vmatmul.mubr.f32.gmra.mrb[0].mxu0 %v384
        %v499 = vpop.f32.mrb[0].mxu0
        %v500 = vadd.f32 0.0, %v499
        %v501 = vpop.f32.mrb[0].mxu0
        %502 = vmatprep.mubr.f32.mxu0 0.0
        %503 = vmatmul.mubr.f32.gmra.mrb[0].mxu0 %v387
        %v504 = vpop.f32.mrb[0].mxu0
        %v505 = vadd.f32 0.0, %v504
        %v506 = vpop.f32.mrb[0].mxu0
        %507 = vmatprep.mubr.f32.mxu0 0.0
        %508 = vmatmul.mubr.f32.gmra.mrb[0].mxu0 %v390
        %v509 = vpop.f32.mrb[0].mxu0
        %v510 = vadd.f32 0.0, %v509
        %v511 = vpop.f32.mrb[0].mxu0
        %512 = vmatprep.mubr.f32.mxu0 0.0
        %513 = vmatmul.mubr.f32.gmra.mrb[0].mxu0 %v393
        %v514 = vpop.f32.mrb[0].mxu0
        %v515 = vadd.f32 0.0, %v514
        %v516 = vpop.f32.mrb[0].mxu0
        %517 = vmatprep.mubr.f32.mxu0 0.0
        %518 = vmatmul.mubr.f32.gmra.mrb[0].mxu0 %v396
        %v519 = vpop.f32.mrb[0].mxu0
        %v520 = vadd.f32 0.0, %v519
        %v521 = vpop.f32.mrb[0].mxu0
        %522 = vmatprep.mubr.f32.mxu0 0.0
        %523 = vmatmul.mubr.f32.gmra.mrb[0].mxu0 %v399
        %v524 = vpop.f32.mrb[0].mxu0
        %v525 = vadd.f32 0.0, %v524
        %v526 = vpop.f32.mrb[0].mxu0
        %527 = vmatprep.mubr.f32.mxu0 0.0
        %528 = vmatmul.mubr.f32.gmra.mrb[0].mxu0 %v402
        %v529 = vpop.f32.mrb[0].mxu0
        %v530 = vadd.f32 0.0, %v529
        %v531 = vpop.f32.mrb[0].mxu0
        %532 = vmatprep.mubr.f32.mxu0 0.0
        %533 = vmatmul.mubr.f32.gmra.mrb[0].mxu0 %v405
        %v534 = vpop.f32.mrb[0].mxu0
        %v535 = vadd.f32 0.0, %v534
        %v536 = vpop.f32.mrb[0].mxu0
        %537 = vmatprep.mubr.f32.mxu0 0.0
        %538 = vmatmul.mubr.f32.gmra.mrb[0].mxu0 %v408
        %v539 = vpop.f32.mrb[0].mxu0
        %v540 = vadd.f32 0.0, %v539
        %v541 = vpop.f32.mrb[0].mxu0
        %542 = vmatprep.mubr.f32.mxu0 0.0
        %543 = vmatmul.mubr.f32.gmra.mrb[0].mxu0 %v411
        %v544 = vpop.f32.mrb[0].mxu0
        %v545 = vadd.f32 0.0, %v544
        %v546 = vpop.f32.mrb[0].mxu0
        %547 = vmatprep.mubr.f32.mxu0 0.0
        %548 = vmatmul.mubr.f32.gmra.mrb[0].mxu0 %v414
        %v549 = vpop.f32.mrb[0].mxu0
        %v550 = vadd.f32 0.0, %v549
        %v551 = vpop.f32.mrb[0].mxu0
        %552 = vmatprep.mubr.f32.mxu0 0.0
        %553 = vmatmul.mubr.f32.gmra.mrb[0].mxu0 %v417
        %v554 = vpop.f32.mrb[0].mxu0
        %v555 = vadd.f32 0.0, %v554
        %v556 = vpop.f32.mrb[0].mxu0
        %557 = vmatprep.mubr.f32.mxu0 0.0
        %558 = vmatmul.mubr.f32.gmra.mrb[0].mxu0 %v420
        %v559 = vpop.f32.mrb[0].mxu0
        %v560 = vadd.f32 0.0, %v559
        %v561 = vpop.f32.mrb[0].mxu0
        %562 = vmatprep.mubr.f32.mxu0 0.0
        %563 = vmatmul.mubr.f32.gmra.mrb[0].mxu0 %v423
        %v564 = vpop.f32.mrb[0].mxu0
        %v565 = vadd.f32 0.0, %v564
        %v566 = vpop.f32.mrb[0].mxu0
        %567 = vmatprep.mubr.f32.mxu0 0.0
        %568 = vmatmul.mubr.f32.gmra.mrb[0].mxu0 %v426
        %v569 = vpop.f32.mrb[0].mxu0
        %v570 = vadd.f32 0.0, %v569
        %v571 = vpop.f32.mrb[0].mxu0
        %572 = vdwg.mxu0
        %573 = vxpose.xlu0.b32.start [1/16] %v344, 128
        %574 = vxpose.xlu0.b32.cont [2/16] 0.0, 128
        %575 = vxpose.xlu0.b32.cont [3/16] 0.0, 128
        %576 = vxpose.xlu0.b32.cont [4/16] 0.0, 128
        %577 = vxpose.xlu0.b32.cont [5/16] 0.0, 128
        %578 = vxpose.xlu0.b32.cont [6/16] 0.0, 128
        %579 = vxpose.xlu0.b32.cont [7/16] 0.0, 128
        %580 = vxpose.xlu0.b32.cont [8/16] 0.0, 128
        %581 = vxpose.xlu0.b32.cont [9/16] 0.0, 128
        %582 = vxpose.xlu0.b32.cont [10/16] 0.0, 128
        %583 = vxpose.xlu0.b32.cont [11/16] 0.0, 128
        %584 = vxpose.xlu0.b32.cont [12/16] 0.0, 128
        %585 = vxpose.xlu0.b32.cont [13/16] 0.0, 128
        %586 = vxpose.xlu0.b32.cont [14/16] 0.0, 128
        %587 = vxpose.xlu0.b32.cont [15/16] 0.0, 128
        %588 = vxpose.xlu0.b32.end [16/16] 0.0, 128
        %v589 = vpop.trf.xlu0
        %v590 = vpop.trf.xlu0
        %v591 = vpop.trf.xlu0
        %v592 = vpop.trf.xlu0
        %v593 = vpop.trf.xlu0
        %v594 = vpop.trf.xlu0
        %v595 = vpop.trf.xlu0
        %v596 = vpop.trf.xlu0
        %v597 = vpop.trf.xlu0
        %v598 = vpop.trf.xlu0
        %v599 = vpop.trf.xlu0
        %v600 = vpop.trf.xlu0
        %v601 = vpop.trf.xlu0
        %v602 = vpop.trf.xlu0
        %v603 = vpop.trf.xlu0
        %v604 = vpop.trf.xlu0
        %v606 = vsel %vm379, %v589, 0
        %v609 = vsel %vm379, %v590, 0
        %v612 = vsel %vm379, %v591, 0
        %v615 = vsel %vm379, %v592, 0
        %v618 = vsel %vm379, %v593, 0
        %v621 = vsel %vm379, %v594, 0
        %v624 = vsel %vm379, %v595, 0
        %v627 = vsel %vm379, %v596, 0
        %v630 = vsel %vm379, %v597, 0
        %v633 = vsel %vm379, %v598, 0
        %v636 = vsel %vm379, %v599, 0
        %v639 = vsel %vm379, %v600, 0
        %v642 = vsel %vm379, %v601, 0
        %v645 = vsel %vm379, %v602, 0
        %v648 = vsel %vm379, %v603, 0
        %v651 = vsel %vm379, %v604, 0
        %653 = vmatprep.subr.mxu0 0.0
        %654 = vmatpush1.msra.mxu0 %v342
        %655 = vmatprep.subr.mxu0 0.0
        %656 = vmatpush1.msra.mxu0 0.0
        %657 = vmatprep.subr.mxu0 0.0
        %658 = vmatpush1.msra.mxu0 0.0
        %659 = vmatprep.subr.mxu0 0.0
        %660 = vmatpush1.msra.mxu0 0.0
        %661 = vmatprep.subr.mxu0 0.0
        %662 = vmatpush1.msra.mxu0 0.0
        %663 = vmatprep.subr.mxu0 0.0
        %664 = vmatpush1.msra.mxu0 0.0
        %665 = vmatprep.subr.mxu0 0.0
        %666 = vmatpush1.msra.mxu0 0.0
        %667 = vmatprep.subr.mxu0 0.0
        %668 = vmatpush1.msra.mxu0 0.0
        %669 = vmatprep.subr.mxu0 0.0
        %670 = vmatpush1.msra.mxu0 0.0
        %671 = vmatprep.subr.mxu0 0.0
        %672 = vmatpush1.msra.mxu0 0.0
        %673 = vmatprep.subr.mxu0 0.0
        %674 = vmatpush1.msra.mxu0 0.0
        %675 = vmatprep.subr.mxu0 0.0
        %676 = vmatpush1.msra.mxu0 0.0
        %677 = vmatprep.subr.mxu0 0.0
        %678 = vmatpush1.msra.mxu0 0.0
        %679 = vmatprep.subr.mxu0 0.0
        %680 = vmatpush1.msra.mxu0 0.0
        %681 = vmatprep.subr.mxu0 0.0
        %682 = vmatpush1.msra.mxu0 0.0
        %683 = vmatprep.subr.mxu0 0.0
        %684 = vmatpush1.msra.mxu0 0.0
        %685 = vmatprep.subr.mxu0 0.0
        %686 = vmatpush1.msra.mxu0 0.0
        %687 = vmatprep.subr.mxu0 0.0
        %688 = vmatpush1.msra.mxu0 0.0
        %689 = vmatprep.subr.mxu0 0.0
        %690 = vmatpush1.msra.mxu0 0.0
        %691 = vmatprep.subr.mxu0 0.0
        %692 = vmatpush1.msra.mxu0 0.0
        %693 = vmatprep.subr.mxu0 0.0
        %694 = vmatpush1.msra.mxu0 0.0
        %695 = vmatprep.subr.mxu0 0.0
        %696 = vmatpush1.msra.mxu0 0.0
        %697 = vmatprep.subr.mxu0 0.0
        %698 = vmatpush1.msra.mxu0 0.0
        %699 = vmatprep.subr.mxu0 0.0
        %700 = vmatpush1.msra.mxu0 0.0
        %701 = vmatprep.subr.mxu0 0.0
        %702 = vmatpush1.msra.mxu0 0.0
        %703 = vmatprep.subr.mxu0 0.0
        %704 = vmatpush1.msra.mxu0 0.0
        %705 = vmatprep.subr.mxu0 0.0
        %706 = vmatpush1.msra.mxu0 0.0
        %707 = vmatprep.subr.mxu0 0.0
        %708 = vmatpush1.msra.mxu0 0.0
        %709 = vmatprep.subr.mxu0 0.0
        %710 = vmatpush1.msra.mxu0 0.0
        %711 = vmatprep.subr.mxu0 0.0
        %712 = vmatpush1.msra.mxu0 0.0
        %713 = vmatprep.subr.mxu0 0.0
        %714 = vmatpush1.msra.mxu0 0.0
        %715 = vmatprep.subr.mxu0 0.0
        %716 = vmatpush1.msra.mxu0 0.0
        %717 = vmatprep.mubr.f32.mxu0 0.0
        %718 = vmatmul.mubr.f32.gmra.mrb[0].mxu0 %v606
        %v719 = vpop.f32.mrb[0].mxu0
        %v720 = vadd.f32 0.0, %v719
        %v721 = vpop.f32.mrb[0].mxu0
        %722 = vmatprep.mubr.f32.mxu0 0.0
        %723 = vmatmul.mubr.f32.gmra.mrb[0].mxu0 %v609
        %v724 = vpop.f32.mrb[0].mxu0
        %v725 = vadd.f32 0.0, %v724
        %v726 = vpop.f32.mrb[0].mxu0
        %727 = vmatprep.mubr.f32.mxu0 0.0
        %728 = vmatmul.mubr.f32.gmra.mrb[0].mxu0 %v612
        %v729 = vpop.f32.mrb[0].mxu0
        %v730 = vadd.f32 0.0, %v729
        %v731 = vpop.f32.mrb[0].mxu0
        %732 = vmatprep.mubr.f32.mxu0 0.0
        %733 = vmatmul.mubr.f32.gmra.mrb[0].mxu0 %v615
        %v734 = vpop.f32.mrb[0].mxu0
        %v735 = vadd.f32 0.0, %v734
        %v736 = vpop.f32.mrb[0].mxu0
        %737 = vmatprep.mubr.f32.mxu0 0.0
        %738 = vmatmul.mubr.f32.gmra.mrb[0].mxu0 %v618
        %v739 = vpop.f32.mrb[0].mxu0
        %v740 = vadd.f32 0.0, %v739
        %v741 = vpop.f32.mrb[0].mxu0
        %742 = vmatprep.mubr.f32.mxu0 0.0
        %743 = vmatmul.mubr.f32.gmra.mrb[0].mxu0 %v621
        %v744 = vpop.f32.mrb[0].mxu0
        %v745 = vadd.f32 0.0, %v744
        %v746 = vpop.f32.mrb[0].mxu0
        %747 = vmatprep.mubr.f32.mxu0 0.0
        %748 = vmatmul.mubr.f32.gmra.mrb[0].mxu0 %v624
        %v749 = vpop.f32.mrb[0].mxu0
        %v750 = vadd.f32 0.0, %v749
        %v751 = vpop.f32.mrb[0].mxu0
        %752 = vmatprep.mubr.f32.mxu0 0.0
        %753 = vmatmul.mubr.f32.gmra.mrb[0].mxu0 %v627
        %v754 = vpop.f32.mrb[0].mxu0
        %v755 = vadd.f32 0.0, %v754
        %v756 = vpop.f32.mrb[0].mxu0
        %757 = vmatprep.mubr.f32.mxu0 0.0
        %758 = vmatmul.mubr.f32.gmra.mrb[0].mxu0 %v630
        %v759 = vpop.f32.mrb[0].mxu0
        %v760 = vadd.f32 0.0, %v759
        %v761 = vpop.f32.mrb[0].mxu0
        %762 = vmatprep.mubr.f32.mxu0 0.0
        %763 = vmatmul.mubr.f32.gmra.mrb[0].mxu0 %v633
        %v764 = vpop.f32.mrb[0].mxu0
        %v765 = vadd.f32 0.0, %v764
        %v766 = vpop.f32.mrb[0].mxu0
        %767 = vmatprep.mubr.f32.mxu0 0.0
        %768 = vmatmul.mubr.f32.gmra.mrb[0].mxu0 %v636
        %v769 = vpop.f32.mrb[0].mxu0
        %v770 = vadd.f32 0.0, %v769
        %v771 = vpop.f32.mrb[0].mxu0
        %772 = vmatprep.mubr.f32.mxu0 0.0
        %773 = vmatmul.mubr.f32.gmra.mrb[0].mxu0 %v639
        %v774 = vpop.f32.mrb[0].mxu0
        %v775 = vadd.f32 0.0, %v774
        %v776 = vpop.f32.mrb[0].mxu0
        %777 = vmatprep.mubr.f32.mxu0 0.0
        %778 = vmatmul.mubr.f32.gmra.mrb[0].mxu0 %v642
        %v779 = vpop.f32.mrb[0].mxu0
        %v780 = vadd.f32 0.0, %v779
        %v781 = vpop.f32.mrb[0].mxu0
        %782 = vmatprep.mubr.f32.mxu0 0.0
        %783 = vmatmul.mubr.f32.gmra.mrb[0].mxu0 %v645
        %v784 = vpop.f32.mrb[0].mxu0
        %v785 = vadd.f32 0.0, %v784
        %v786 = vpop.f32.mrb[0].mxu0
        %787 = vmatprep.mubr.f32.mxu0 0.0
        %788 = vmatmul.mubr.f32.gmra.mrb[0].mxu0 %v648
        %v789 = vpop.f32.mrb[0].mxu0
        %v790 = vadd.f32 0.0, %v789
        %v791 = vpop.f32.mrb[0].mxu0
        %792 = vmatprep.mubr.f32.mxu0 0.0
        %793 = vmatmul.mubr.f32.gmra.mrb[0].mxu0 %v651
        %v794 = vpop.f32.mrb[0].mxu0
        %v795 = vadd.f32 0.0, %v794
        %v796 = vpop.f32.mrb[0].mxu0
        %797 = vdwg.mxu0
        %v798 = vld [vmem:[#allocation2] sm:$0x1]
        %v799 = vld [vmem:[#allocation2 + $0x1] sm:$0x1]
        %v800 = vmax.f32 %v495, %v505
        %v801 = vmax.f32 %v500, %v510
        %v802 = vmax.f32 %v800, %v515
        %v803 = vmax.f32 %v801, %v520
        %v804 = vmax.f32 %v802, %v525
        %v805 = vmax.f32 %v803, %v530
        %v806 = vmax.f32 %v804, %v535
        %v807 = vmax.f32 %v805, %v540
        %v808 = vmax.f32 %v806, %v545
        %v809 = vmax.f32 %v807, %v550
        %v810 = vmax.f32 %v808, %v555
        %v811 = vmax.f32 %v809, %v560
        %v812 = vmax.f32 %v810, %v565
        %v813 = vmax.f32 %v811, %v570
        %v814 = vmax.f32 %v812, %v813
        %v815 = vrot.slane %v814, 4
        %v816 = vmax.f32 %v814, %v815
        %v817 = vrot.slane %v816, 2
        %v818 = vmax.f32 %v816, %v817
        %v819 = vrot.slane %v818, 1
        %v820 = vmax.f32 %v818, %v819
        %v821 = vmax.f32 %v720, %v730
        %v822 = vmax.f32 %v725, %v735
        %v823 = vmax.f32 %v821, %v740
        %v824 = vmax.f32 %v822, %v745
        %v825 = vmax.f32 %v823, %v750
        %v826 = vmax.f32 %v824, %v755
        %v827 = vmax.f32 %v825, %v760
        %v828 = vmax.f32 %v826, %v765
        %v829 = vmax.f32 %v827, %v770
        %v830 = vmax.f32 %v828, %v775
        %v831 = vmax.f32 %v829, %v780
        %v832 = vmax.f32 %v830, %v785
        %v833 = vmax.f32 %v831, %v790
        %v834 = vmax.f32 %v832, %v795
        %v835 = vmax.f32 %v833, %v834
        %v836 = vrot.slane %v835, 4
        %v837 = vmax.f32 %v835, %v836
        %v838 = vrot.slane %v837, 2
        %v839 = vmax.f32 %v837, %v838
        %v840 = vrot.slane %v839, 1
        %v841 = vmax.f32 %v839, %v840
        %v842 = vmax.f32 %v798, %v820
        %v843 = vmax.f32 %v799, %v841
        %v844 = vsub.f32 %v798, %v842
        %v845 = vsub.f32 %v799, %v843
        %v846 = vmul.f32 %v844, 1.442695
        %v847 = vpow.pop %v846
        %v848 = vmul.f32 %v845, 1.442695
        %v849 = vpow.pop %v848
        %v852 = vlaneseq
        %v853 = vshrl.u32 %v852, 7
        %v854 = vsub.s32 0, %v853
        %v855 = vrot.slane %v842, %v854
        %v856 = vlaneseq
        %v857 = vshrl.u32 %v856, 7
        %v858 = vsub.s32 0, %v857
        %v859 = vrot.slane %v843, %v858
        %v862 = vsub.f32 %v495, %v855
        %v863 = vsub.f32 %v500, %v855
        %v864 = vsub.f32 %v505, %v855
        %v865 = vsub.f32 %v510, %v855
        %v866 = vsub.f32 %v515, %v855
        %v867 = vsub.f32 %v520, %v855
        %v868 = vsub.f32 %v525, %v855
        %v869 = vsub.f32 %v530, %v855
        %v870 = vsub.f32 %v535, %v855
        %v871 = vsub.f32 %v540, %v855
        %v872 = vsub.f32 %v545, %v855
        %v873 = vsub.f32 %v550, %v855
        %v874 = vsub.f32 %v555, %v855
        %v875 = vsub.f32 %v560, %v855
        %v876 = vsub.f32 %v565, %v855
        %v877 = vsub.f32 %v570, %v855
        %v878 = vsub.f32 %v720, %v859
        %v879 = vsub.f32 %v725, %v859
        %v880 = vsub.f32 %v730, %v859
        %v881 = vsub.f32 %v735, %v859
        %v882 = vsub.f32 %v740, %v859
        %v883 = vsub.f32 %v745, %v859
        %v884 = vsub.f32 %v750, %v859
        %v885 = vsub.f32 %v755, %v859
        %v886 = vsub.f32 %v760, %v859
        %v887 = vsub.f32 %v765, %v859
        %v888 = vsub.f32 %v770, %v859
        %v889 = vsub.f32 %v775, %v859
        %v890 = vsub.f32 %v780, %v859
        %v891 = vsub.f32 %v785, %v859
        %v892 = vsub.f32 %v790, %v859
        %v893 = vsub.f32 %v795, %v859
        %v894 = vmul.f32 %v862, 1.442695
        %v895 = vpow.pop %v894
        %v896 = vmul.f32 %v863, 1.442695
        %v897 = vpow.pop %v896
        %v898 = vmul.f32 %v864, 1.442695
        %v899 = vpow.pop %v898
        %v900 = vmul.f32 %v865, 1.442695
        %v901 = vpow.pop %v900
        %v902 = vmul.f32 %v866, 1.442695
        %v903 = vpow.pop %v902
        %v904 = vmul.f32 %v867, 1.442695
        %v905 = vpow.pop %v904
        %v906 = vmul.f32 %v868, 1.442695
        %v907 = vpow.pop %v906
        %v908 = vmul.f32 %v869, 1.442695
        %v909 = vpow.pop %v908
        %v910 = vmul.f32 %v870, 1.442695
        %v911 = vpow.pop %v910
        %v912 = vmul.f32 %v871, 1.442695
        %v913 = vpow.pop %v912
        %v914 = vmul.f32 %v872, 1.442695
        %v915 = vpow.pop %v914
        %v916 = vmul.f32 %v873, 1.442695
        %v917 = vpow.pop %v916
        %v918 = vmul.f32 %v874, 1.442695
        %v919 = vpow.pop %v918
        %v920 = vmul.f32 %v875, 1.442695
        %v921 = vpow.pop %v920
        %v922 = vmul.f32 %v876, 1.442695
        %v923 = vpow.pop %v922
        %v924 = vmul.f32 %v877, 1.442695
        %v925 = vpow.pop %v924
        %v926 = vmul.f32 %v878, 1.442695
        %v927 = vpow.pop %v926
        %v928 = vmul.f32 %v879, 1.442695
        %v929 = vpow.pop %v928
        %v930 = vmul.f32 %v880, 1.442695
        %v931 = vpow.pop %v930
        %v932 = vmul.f32 %v881, 1.442695
        %v933 = vpow.pop %v932
        %v934 = vmul.f32 %v882, 1.442695
        %v935 = vpow.pop %v934
        %v936 = vmul.f32 %v883, 1.442695
        %v937 = vpow.pop %v936
        %v938 = vmul.f32 %v884, 1.442695
        %v939 = vpow.pop %v938
        %v940 = vmul.f32 %v885, 1.442695
        %v941 = vpow.pop %v940
        %v942 = vmul.f32 %v886, 1.442695
        %v943 = vpow.pop %v942
        %v944 = vmul.f32 %v887, 1.442695
        %v945 = vpow.pop %v944
        %v946 = vmul.f32 %v888, 1.442695
        %v947 = vpow.pop %v946
        %v948 = vmul.f32 %v889, 1.442695
        %v949 = vpow.pop %v948
        %v950 = vmul.f32 %v890, 1.442695
        %v951 = vpow.pop %v950
        %v952 = vmul.f32 %v891, 1.442695
        %v953 = vpow.pop %v952
        %v954 = vmul.f32 %v892, 1.442695
        %v955 = vpow.pop %v954
        %v956 = vmul.f32 %v893, 1.442695
        %v957 = vpow.pop %v956
        %s958 = smul.u32 %s32, 128
        %v959 = vlaneseq
        %v960 = vshrl.u32 %v959, 7
        %v961 = vadd.s32 %v960, 8
        %v962 = vadd.s32 %v960, 16
        %v963 = vadd.s32 %v960, 24
        %v964 = vadd.s32 %v960, 32
        %v965 = vadd.s32 %v960, 40
        %v966 = vadd.s32 %v960, 48
        %v967 = vadd.s32 %v960, 56
        %v968 = vadd.s32 %v960, 64
        %v969 = vadd.s32 %v960, 72
        %v970 = vadd.s32 %v960, 80
        %v971 = vadd.s32 %v960, 88
        %v972 = vadd.s32 %v960, 96
        %v973 = vadd.s32 %v960, 104
        %v974 = vadd.s32 %v960, 112
        %v975 = vadd.s32 %v960, 120
        %v976 = vstv %s958
        %v977 = vadd.s32 %v976, %v960
        %v978 = vadd.s32 %v976, %v961
        %v979 = vadd.s32 %v976, %v962
        %v980 = vadd.s32 %v976, %v963
        %v981 = vadd.s32 %v976, %v964
        %v982 = vadd.s32 %v976, %v965
        %v983 = vadd.s32 %v976, %v966
        %v984 = vadd.s32 %v976, %v967
        %v985 = vadd.s32 %v976, %v968
        %v986 = vadd.s32 %v976, %v969
        %v987 = vadd.s32 %v976, %v970
        %v988 = vadd.s32 %v976, %v971
        %v989 = vadd.s32 %v976, %v972
        %v990 = vadd.s32 %v976, %v973
        %v991 = vadd.s32 %v976, %v974
        %v992 = vadd.s32 %v976, %v975
        %vm993 = vcmp.lt.s32.totalorder %v977, 16
        %vm994 = vcmp.lt.s32.totalorder %v978, 16
        %vm995 = vcmp.lt.s32.totalorder %v979, 16
        %vm996 = vcmp.lt.s32.totalorder %v980, 16
        %vm997 = vcmp.lt.s32.totalorder %v981, 16
        %vm998 = vcmp.lt.s32.totalorder %v982, 16
        %vm999 = vcmp.lt.s32.totalorder %v983, 16
        %vm1000 = vcmp.lt.s32.totalorder %v984, 16
        %vm1001 = vcmp.lt.s32.totalorder %v985, 16
        %vm1002 = vcmp.lt.s32.totalorder %v986, 16
        %vm1003 = vcmp.lt.s32.totalorder %v987, 16
        %vm1004 = vcmp.lt.s32.totalorder %v988, 16
        %vm1005 = vcmp.lt.s32.totalorder %v989, 16
        %vm1006 = vcmp.lt.s32.totalorder %v990, 16
        %vm1007 = vcmp.lt.s32.totalorder %v991, 16
        %vm1008 = vcmp.lt.s32.totalorder %v992, 16
        %v1009 = vsel %vm993, %v895, 0.0
        %v1010 = vsel %vm994, %v897, 0.0
        %v1011 = vsel %vm995, %v899, 0.0
        %v1012 = vsel %vm996, %v901, 0.0
        %v1013 = vsel %vm997, %v903, 0.0
        %v1014 = vsel %vm998, %v905, 0.0
        %v1015 = vsel %vm999, %v907, 0.0
        %v1016 = vsel %vm1000, %v909, 0.0
        %v1017 = vsel %vm1001, %v911, 0.0
        %v1018 = vsel %vm1002, %v913, 0.0
        %v1019 = vsel %vm1003, %v915, 0.0
        %v1020 = vsel %vm1004, %v917, 0.0
        %v1021 = vsel %vm1005, %v919, 0.0
        %v1022 = vsel %vm1006, %v921, 0.0
        %v1023 = vsel %vm1007, %v923, 0.0
        %v1024 = vsel %vm1008, %v925, 0.0
        %v1025 = vsel %vm993, %v927, 0.0
        %v1026 = vsel %vm994, %v929, 0.0
        %v1027 = vsel %vm995, %v931, 0.0
        %v1028 = vsel %vm996, %v933, 0.0
        %v1029 = vsel %vm997, %v935, 0.0
        %v1030 = vsel %vm998, %v937, 0.0
        %v1031 = vsel %vm999, %v939, 0.0
        %v1032 = vsel %vm1000, %v941, 0.0
        %v1033 = vsel %vm1001, %v943, 0.0
        %v1034 = vsel %vm1002, %v945, 0.0
        %v1035 = vsel %vm1003, %v947, 0.0
        %v1036 = vsel %vm1004, %v949, 0.0
        %v1037 = vsel %vm1005, %v951, 0.0
        %v1038 = vsel %vm1006, %v953, 0.0
        %v1039 = vsel %vm1007, %v955, 0.0
        %v1040 = vsel %vm1008, %v957, 0.0
        %v1041 = vld [vmem:[#allocation3] sm:$0x1]
        %v1042 = vld [vmem:[#allocation3 + $0x1] sm:$0x1]
        %v1043 = vmul.f32 %v847, %v1041
        %v1044 = vmul.f32 %v849, %v1042
        %v1045 = vadd.f32 %v1009, %v1010
        %v1046 = vadd.f32 %v1045, %v1011
        %v1047 = vadd.f32 %v1046, %v1012
        %v1048 = vadd.f32 %v1047, %v1013
        %v1049 = vadd.f32 %v1048, %v1014
        %v1050 = vadd.f32 %v1049, %v1015
        %v1051 = vadd.f32 %v1050, %v1016
        %v1052 = vadd.f32 %v1051, %v1017
        %v1053 = vadd.f32 %v1052, %v1018
        %v1054 = vadd.f32 %v1053, %v1019
        %v1055 = vadd.f32 %v1054, %v1020
        %v1056 = vadd.f32 %v1055, %v1021
        %v1057 = vadd.f32 %v1056, %v1022
        %v1058 = vadd.f32 %v1057, %v1023
        %v1059 = vadd.f32 %v1058, %v1024
        %v1060 = vrot.slane %v1059, 4
        %v1061 = vadd.f32 %v1059, %v1060
        %v1062 = vrot.slane %v1061, 2
        %v1063 = vadd.f32 %v1061, %v1062
        %v1064 = vrot.slane %v1063, 1
        %v1065 = vadd.f32 %v1063, %v1064
        %v1066 = vadd.f32 %v1025, %v1026
        %v1067 = vadd.f32 %v1066, %v1027
        %v1068 = vadd.f32 %v1067, %v1028
        %v1069 = vadd.f32 %v1068, %v1029
        %v1070 = vadd.f32 %v1069, %v1030
        %v1071 = vadd.f32 %v1070, %v1031
        %v1072 = vadd.f32 %v1071, %v1032
        %v1073 = vadd.f32 %v1072, %v1033
        %v1074 = vadd.f32 %v1073, %v1034
        %v1075 = vadd.f32 %v1074, %v1035
        %v1076 = vadd.f32 %v1075, %v1036
        %v1077 = vadd.f32 %v1076, %v1037
        %v1078 = vadd.f32 %v1077, %v1038
        %v1079 = vadd.f32 %v1078, %v1039
        %v1080 = vadd.f32 %v1079, %v1040
        %v1081 = vrot.slane %v1080, 4
        %v1082 = vadd.f32 %v1080, %v1081
        %v1083 = vrot.slane %v1082, 2
        %v1084 = vadd.f32 %v1082, %v1083
        %v1085 = vrot.slane %v1084, 1
        %v1086 = vadd.f32 %v1084, %v1085
        %v1087 = vadd.f32 %v1043, %v1065
        %v1088 = vadd.f32 %v1044, %v1086
        %1089 = vst [vmem:[#allocation3] sm:$0x1] %v1087
        %1090 = vst [vmem:[#allocation3 + $0x1] sm:$0x1] %v1088
        %1091 = vmatprep.subr.mxu0 0.0
        %1092 = vmatpush1.msra.mxu0 %v1009
        %1093 = vmatprep.subr.mxu0 0.0
        %1094 = vmatpush1.msra.mxu0 %v1010
        %1095 = vmatprep.subr.mxu0 0.0
        %1096 = vmatpush1.msra.mxu0 %v1011
        %1097 = vmatprep.subr.mxu0 0.0
        %1098 = vmatpush1.msra.mxu0 %v1012
        %1099 = vmatprep.subr.mxu0 0.0
        %1100 = vmatpush1.msra.mxu0 %v1013
        %1101 = vmatprep.subr.mxu0 0.0
        %1102 = vmatpush1.msra.mxu0 %v1014
        %1103 = vmatprep.subr.mxu0 0.0
        %1104 = vmatpush1.msra.mxu0 %v1015
        %1105 = vmatprep.subr.mxu0 0.0
        %1106 = vmatpush1.msra.mxu0 %v1016
        %1107 = vmatprep.subr.mxu0 0.0
        %1108 = vmatpush1.msra.mxu0 %v1017
        %1109 = vmatprep.subr.mxu0 0.0
        %1110 = vmatpush1.msra.mxu0 %v1018
        %1111 = vmatprep.subr.mxu0 0.0
        %1112 = vmatpush1.msra.mxu0 %v1019
        %1113 = vmatprep.subr.mxu0 0.0
        %1114 = vmatpush1.msra.mxu0 %v1020
        %1115 = vmatprep.subr.mxu0 0.0
        %1116 = vmatpush1.msra.mxu0 %v1021
        %1117 = vmatprep.subr.mxu0 0.0
        %1118 = vmatpush1.msra.mxu0 %v1022
        %1119 = vmatprep.subr.mxu0 0.0
        %1120 = vmatpush1.msra.mxu0 %v1023
        %1121 = vmatprep.subr.mxu0 0.0
        %1122 = vmatpush1.msra.mxu0 %v1024
        %1123 = vmatprep.subr.mxu0 0.0
        %1124 = vmatpush1.msra.mxu0 0.0
        %1125 = vmatprep.subr.mxu0 0.0
        %1126 = vmatpush1.msra.mxu0 0.0
        %1127 = vmatprep.subr.mxu0 0.0
        %1128 = vmatpush1.msra.mxu0 0.0
        %1129 = vmatprep.subr.mxu0 0.0
        %1130 = vmatpush1.msra.mxu0 0.0
        %1131 = vmatprep.subr.mxu0 0.0
        %1132 = vmatpush1.msra.mxu0 0.0
        %1133 = vmatprep.subr.mxu0 0.0
        %1134 = vmatpush1.msra.mxu0 0.0
        %1135 = vmatprep.subr.mxu0 0.0
        %1136 = vmatpush1.msra.mxu0 0.0
        %1137 = vmatprep.subr.mxu0 0.0
        %1138 = vmatpush1.msra.mxu0 0.0
        %1139 = vmatprep.subr.mxu0 0.0
        %1140 = vmatpush1.msra.mxu0 0.0
        %1141 = vmatprep.subr.mxu0 0.0
        %1142 = vmatpush1.msra.mxu0 0.0
        %1143 = vmatprep.subr.mxu0 0.0
        %1144 = vmatpush1.msra.mxu0 0.0
        %1145 = vmatprep.subr.mxu0 0.0
        %1146 = vmatpush1.msra.mxu0 0.0
        %1147 = vmatprep.subr.mxu0 0.0
        %1148 = vmatpush1.msra.mxu0 0.0
        %1149 = vmatprep.subr.mxu0 0.0
        %1150 = vmatpush1.msra.mxu0 0.0
        %1151 = vmatprep.subr.mxu0 0.0
        %1152 = vmatpush1.msra.mxu0 0.0
        %1153 = vmatprep.subr.mxu0 0.0
        %1154 = vmatpush1.msra.mxu0 0.0
        %1155 = vmatprep.mubr.f32.mxu0 0.0
        %1156 = vmatmul.mubr.f32.gmra.mrb[0].mxu0 %v345
        %v1157 = vpop.f32.mrb[0].mxu0
        %v1158 = vadd.f32 0.0, %v1157
        %v1159 = vpop.f32.mrb[0].mxu0
        %1160 = vdwg.mxu0
        %1161 = vmatprep.subr.mxu0 0.0
        %1162 = vmatpush1.msra.mxu0 %v1025
        %1163 = vmatprep.subr.mxu0 0.0
        %1164 = vmatpush1.msra.mxu0 %v1026
        %1165 = vmatprep.subr.mxu0 0.0
        %1166 = vmatpush1.msra.mxu0 %v1027
        %1167 = vmatprep.subr.mxu0 0.0
        %1168 = vmatpush1.msra.mxu0 %v1028
        %1169 = vmatprep.subr.mxu0 0.0
        %1170 = vmatpush1.msra.mxu0 %v1029
        %1171 = vmatprep.subr.mxu0 0.0
        %1172 = vmatpush1.msra.mxu0 %v1030
        %1173 = vmatprep.subr.mxu0 0.0
        %1174 = vmatpush1.msra.mxu0 %v1031
        %1175 = vmatprep.subr.mxu0 0.0
        %1176 = vmatpush1.msra.mxu0 %v1032
        %1177 = vmatprep.subr.mxu0 0.0
        %1178 = vmatpush1.msra.mxu0 %v1033
        %1179 = vmatprep.subr.mxu0 0.0
        %1180 = vmatpush1.msra.mxu0 %v1034
        %1181 = vmatprep.subr.mxu0 0.0
        %1182 = vmatpush1.msra.mxu0 %v1035
        %1183 = vmatprep.subr.mxu0 0.0
        %1184 = vmatpush1.msra.mxu0 %v1036
        %1185 = vmatprep.subr.mxu0 0.0
        %1186 = vmatpush1.msra.mxu0 %v1037
        %1187 = vmatprep.subr.mxu0 0.0
        %1188 = vmatpush1.msra.mxu0 %v1038
        %1189 = vmatprep.subr.mxu0 0.0
        %1190 = vmatpush1.msra.mxu0 %v1039
        %1191 = vmatprep.subr.mxu0 0.0
        %1192 = vmatpush1.msra.mxu0 %v1040
        %1193 = vmatprep.subr.mxu0 0.0
        %1194 = vmatpush1.msra.mxu0 0.0
        %1195 = vmatprep.subr.mxu0 0.0
        %1196 = vmatpush1.msra.mxu0 0.0
        %1197 = vmatprep.subr.mxu0 0.0
        %1198 = vmatpush1.msra.mxu0 0.0
        %1199 = vmatprep.subr.mxu0 0.0
        %1200 = vmatpush1.msra.mxu0 0.0
        %1201 = vmatprep.subr.mxu0 0.0
        %1202 = vmatpush1.msra.mxu0 0.0
        %1203 = vmatprep.subr.mxu0 0.0
        %1204 = vmatpush1.msra.mxu0 0.0
        %1205 = vmatprep.subr.mxu0 0.0
        %1206 = vmatpush1.msra.mxu0 0.0
        %1207 = vmatprep.subr.mxu0 0.0
        %1208 = vmatpush1.msra.mxu0 0.0
        %1209 = vmatprep.subr.mxu0 0.0
        %1210 = vmatpush1.msra.mxu0 0.0
        %1211 = vmatprep.subr.mxu0 0.0
        %1212 = vmatpush1.msra.mxu0 0.0
        %1213 = vmatprep.subr.mxu0 0.0
        %1214 = vmatpush1.msra.mxu0 0.0
        %1215 = vmatprep.subr.mxu0 0.0
        %1216 = vmatpush1.msra.mxu0 0.0
        %1217 = vmatprep.subr.mxu0 0.0
        %1218 = vmatpush1.msra.mxu0 0.0
        %1219 = vmatprep.subr.mxu0 0.0
        %1220 = vmatpush1.msra.mxu0 0.0
        %1221 = vmatprep.subr.mxu0 0.0
        %1222 = vmatpush1.msra.mxu0 0.0
        %1223 = vmatprep.subr.mxu0 0.0
        %1224 = vmatpush1.msra.mxu0 0.0
        %1225 = vmatprep.mubr.f32.mxu0 0.0
        %1226 = vmatmul.mubr.f32.gmra.mrb[0].mxu0 %v346
        %v1227 = vpop.f32.mrb[0].mxu0
        %v1228 = vadd.f32 0.0, %v1227
        %v1229 = vpop.f32.mrb[0].mxu0
        %1230 = vdwg.mxu0
        %v1231 = vld [vmem:[#allocation4] sm:$0xff]
        %v1232 = vld [vmem:[#allocation4 + $0x8] sm:$0xff]
        %v1235 = vlaneseq
        %v1236 = vshrl.u32 %v1235, 7
        %v1237 = vsub.s32 0, %v1236
        %v1238 = vrot.slane %v847, %v1237
        %v1239 = vlaneseq
        %v1240 = vshrl.u32 %v1239, 7
        %v1241 = vsub.s32 0, %v1240
        %v1242 = vrot.slane %v849, %v1241
        %v1245 = vmul.f32 %v1238, %v1231
        %v1246 = vmul.f32 %v1242, %v1232
        %v1247 = vadd.f32 %v1245, %v1158
        %v1248 = vadd.f32 %v1246, %v1228
        %1249 = vst [vmem:[#allocation4] sm:$0xff] %v1247
        %1250 = vst [vmem:[#allocation4 + $0x8] sm:$0xff] %v1248
        %1251 = vst [vmem:[#allocation2] sm:$0x1] %v842
        %1252 = vst [vmem:[#allocation2 + $0x1] sm:$0x1] %v843
        // Predicated region
        $region49: #{tpu_custom_call.1} parent=31 // pred_check
          %p1253 = pneg %p329
        $region50: #{tpu_custom_call.1} parent=31 // pred_check_branch
          %1255 = sbr.rel (%p1253) target = $region52
        $region51: #{tpu_custom_call.1} parent=31 // pred_region
          %v1256 = vld [vmem:[#allocation3] sm:$0x1]
          %v1257 = vld [vmem:[#allocation3 + $0x1] sm:$0x1]
          %v1258 = vrcp.pop %v1256
          %v1259 = vmul.f32 1.0, %v1258
          %v1260 = vrcp.pop %v1257
          %v1261 = vmul.f32 1.0, %v1260
          %v1262 = vld [vmem:[#allocation4] sm:$0xff]
          %v1263 = vld [vmem:[#allocation4 + $0x8] sm:$0xff]
          %v1266 = vlaneseq
          %v1267 = vshrl.u32 %v1266, 7
          %v1268 = vsub.s32 0, %v1267
          %v1269 = vrot.slane %v1259, %v1268
          %v1270 = vlaneseq
          %v1271 = vshrl.u32 %v1270, 7
          %v1272 = vsub.s32 0, %v1271
          %v1273 = vrot.slane %v1261, %v1272
          %v1276 = vmul.f32 %v1262, %v1269
          %v1277 = vmul.f32 %v1263, %v1273
          %1278 = vst [vmem:[%s322] sm:$0xff] %v1276
          %1279 = vst [vmem:[%s322 + $0x8] sm:$0xff] %v1277
        $region52: #{tpu_custom_call.1} parent=31 // pred_fallthru
          _
        %s1280 = sand.u32 %s155, 1
        %s1281 = scalar_lea.sflag [#allocation7], %s1280
        %s1282 = sand.u32 %s155, 1
        %s1283 = smul.addr %s1282, 16
        %s1284 = scalar_lea.vmem [#allocation11], %s1283
        // Predicated region
        $region53: #{tpu_custom_call.1} parent=31 // pred_check
          %p1285 = pneg %p165
        $region54: #{tpu_custom_call.1} parent=31 // pred_check_branch
          %1287 = sbr.rel (%p1285) target = $region56
        $region55: #{tpu_custom_call.1} parent=31 // pred_region
          %s1288 = smul.u32 2, %s30
          %s1290 = ssub.s32 256, 256
          %1291 = vsyncadd %s1281, %s1290
          %s1292 = sadd.s32 %s31, %s1288
          %s1293 = smul.addr %s29, 2
          %s1294 = sadd.s32 %s1292, %s1293
          %s1295 = smul.addr %s1294, 128
          %s1296 = scalar_lea.hbm %s3, %s1295
          %s1297 = sshll.u32 %s1284, 4
          %s1298 = int_to_ptr.vmem [resolvable:$true] %s1297
          %1303 = dma.vmem_to_hbm [thread:$0]  %s1298, 256, %s1296, %s1281, 128, 128, 8
        $region56: #{tpu_custom_call.1} parent=31 // pred_fallthru
          _
      $region32: #{tpu_custom_call.1} parent=5 // pred_fallthru
        _
      %p1304 = scmp.le.s32.totalorder 2, %s18
      // Predicated region
      $region57: #{tpu_custom_call.1} parent=5 // pred_check
        %p1305 = pneg %p1304
      $region58: #{tpu_custom_call.1} parent=5 // pred_check_branch
        %1307 = sbr.rel (%p1305) target = $region60
      $region59: #{tpu_custom_call.1} parent=5 // pred_region
        %s1308 = ssub.s32 %s18, 2
        // Predicated region
        $region61: #{tpu_custom_call.1} parent=59 // pred_check
          %p1309 = pneg %p171
        $region62: #{tpu_custom_call.1} parent=59 // pred_check_branch
          %1311 = sbr.rel (%p1309) target = $region64
        $region63: #{tpu_custom_call.1} parent=59 // pred_region
          %s1312 = sand.u32 %s156, 1
          %s1313 = scalar_lea.sflag [#allocation7], %s1312
          %s1314 = sand.u32 %s156, 1
          %s1315 = smul.addr %s1314, 16
          %s1316 = scalar_lea.vmem [#allocation11], %s1315
          %1317 = dma.done %s1313, 256
        $region64: #{tpu_custom_call.1} parent=59 // pred_fallthru
          _
      $region60: #{tpu_custom_call.1} parent=5 // pred_fallthru
        _
    $region6: #{tpu_custom_call.1} parent=1 // loop_footer
      %s22 = sadd.s32 1, %s18
    $region7: #{tpu_custom_call.1} parent=1 // loop_footer_branch
      %17 = sbr.rel target = $region3
    $region8: #{tpu_custom_call.1} parent=1 // loop_exit
      _
    %1318 = vsyncpa [#allocation6], 1
    %s1319 = scalar_lea.sflag [#allocation6], 1
    %1320 = vsyncpa %s1319, 1
    %1321 = vsyncpa [#allocation9], 1
    %s1322 = scalar_lea.sflag [#allocation9], 1
    %1323 = vsyncpa %s1322, 1
    %1324 = vsyncpa [#allocation7], 1
    %s1325 = scalar_lea.sflag [#allocation7], 1
    %1326 = vsyncpa %s1325, 1

</llo_original>
